<compile_context>
chip_gen: v7x
topology: tpu7x:2x2x1
jax: 0.10.0
libtpu: 0.0.40
codegen_flags: <defaults>
</compile_context>

<pallas_src>
import jax
import jax.numpy as jnp
from jax.experimental import pallas as pl
from jax.experimental.pallas import tpu as pltpu


def _bmm_moe_kernel(h_ref, wg_ref, wu_ref, wd_ref, out_ref, acc_ref):
    # One grid step at (expert e, token-tile t, intermediate-tile fi):
    #   h_ref  : (tT, F)    activation tile (resident across fi)
    #   wg_ref : (F, tFi)   gate-projection weight chunk
    #   wu_ref : (F, tFi)   up-projection weight chunk
    #   wd_ref : (tFi, F)   down-projection weight chunk
    #   out_ref: (tT, F)    written once at fi == last
    #   acc_ref: (tT, F)    f32 VMEM accumulator over the fi reduction axis
    fi = pl.program_id(2)

    @pl.when(fi == 0)
    def _init():
        acc_ref[...] = jnp.zeros_like(acc_ref)

    h = h_ref[...]                                                       # (tT, F)
    gate = jnp.dot(h, wg_ref[...], preferred_element_type=jnp.float32)   # (tT, tFi)
    up = jnp.dot(h, wu_ref[...], preferred_element_type=jnp.float32)     # (tT, tFi)
    # f32 gating on the f32 accumulator outputs; cast only for the second MXU pass.
    inter = up * jnp.maximum(gate, 0.0)
    acc_ref[...] += jnp.dot(inter.astype(wd_ref.dtype), wd_ref[...],
                            preferred_element_type=jnp.float32)          # (tT, F)

    @pl.when(fi == pl.num_programs(2) - 1)
    def _finalize():
        out_ref[...] = acc_ref[...].astype(out_ref.dtype)


def _pick_tile(dim, cap, align):
    """Largest tile <= cap that divides `dim` and is `align`-aligned."""
    if dim <= cap:
        return dim
    t = (cap // align) * align
    while t >= align:
        if dim % t == 0:
            return t
        t -= align
    raise ValueError(
        f"No {align}-aligned tile <= {cap} divides dimension {dim}; "
        f"pad the dimension or pass explicit tile caps.")


def _device_vmem_bytes():
    try:
        info = pltpu.get_tpu_info()
        return int(getattr(info, "vmem_capacity_bytes", 128 * 1024 * 1024))
    except Exception:
        return 128 * 1024 * 1024


def _device_kind():
    try:
        return jax.devices()[0].device_kind.lower()
    except Exception:
        return ""


def _default_tile_caps(vmem_bytes, device_kind):
    # v5e: 4x128^2 MXU, roofline ~240 flops/byte -> tT=256 suffices; large tFi
    #      amortizes the fixed per-fi-step accumulator RMW and grid overhead.
    # v7x: 64 MiB VMEM, roofline ~310 flops/byte -> tT~512, tFi~256.
    # v6e: 128 MiB VMEM, roofline ~650 flops/byte -> tT~1024 to reach MXU-bound.
    if "v5" in device_kind:
        return 256, 1024
    if vmem_bytes <= 96 * 1024 * 1024:          # v7x-class (64 MiB physical VMEM)
        return 512, 256
    return 1024, 512                            # v6e-class


def _vmem_footprint(tT, tFi, F, itemsize):
    # Already counts double-buffering of every streamed operand.
    return (2 * tT * F * itemsize        # activation tile
            + 2 * 2 * F * tFi * itemsize  # gate + up weight chunks
            + 2 * tFi * F * itemsize     # down weight chunk
            + tT * F * 4                 # f32 accumulator scratch
            + 2 * tT * F * itemsize)     # output tile


def bmm_forward(hidden_states, gate_up_proj, down_proj,
                token_tile_cap=None, inter_tile_cap=None, compute_dtype="auto"):
    """hidden_states: (E*T, F); gate_up_proj: (E, F, 2F); down_proj: (E, F, F)."""
    num_experts, num_features, two_f = gate_up_proj.shape
    assert two_f == 2 * num_features
    total_tokens = hidden_states.shape[0]
    assert total_tokens % num_experts == 0, (
        "hidden_states rows must be divisible by num_experts "
        "(tokens pre-sorted per expert)")
    T = total_tokens // num_experts
    F = num_features
    out_dtype = hidden_states.dtype

    if compute_dtype == "auto":
        # bf16 operands are the production path (MXU is bf16-native everywhere and
        # weight DMA bytes halve); strict-tolerance toy shapes keep their dtype.
        compute_dtype = jnp.bfloat16 if F >= 1024 else None
    if compute_dtype is not None:
        hidden_states = hidden_states.astype(compute_dtype)
        gate_up_proj = gate_up_proj.astype(compute_dtype)
        down_proj = down_proj.astype(compute_dtype)

    vmem_capacity = _device_vmem_bytes()
    kind = _device_kind()
    def_t_cap, def_i_cap = _default_tile_caps(vmem_capacity, kind)
    if token_tile_cap is None:
        token_tile_cap = def_t_cap
    if inter_tile_cap is None:
        inter_tile_cap = def_i_cap

    # Align tFi to 256 when possible (v6e/v7x MXUs are 256 wide in N); 128 otherwise.
    fi_align = 256 if (F % 256 == 0 and inter_tile_cap >= 256) else 128

    itemsize = jnp.dtype(hidden_states.dtype).itemsize
    tT = _pick_tile(T, token_tile_cap, 128)
    tFi = _pick_tile(F, inter_tile_cap, fi_align)

    # Shrink tiles if the (double-buffered) footprint exceeds ~80% of physical VMEM.
    budget = int(0.80 * vmem_capacity)
    for _ in range(8):
        if _vmem_footprint(tT, tFi, F, itemsize) <= budget:
            break
        if tT >= 256 and tT % 2 == 0 and T % (tT // 2) == 0:
            tT //= 2
        elif tFi >= 256 and tFi % 2 == 0 and F % (tFi // 2) == 0:
            tFi //= 2
        else:
            break

    # v7x megacore balance: make sure the two "parallel" grid axes expose >= 2
    # units of work so a TensorCore is not left idle.
    if (vmem_capacity <= 96 * 1024 * 1024 and num_experts * (T // tT) < 2
            and tT % 2 == 0 and T % (tT // 2) == 0 and (tT // 2) % 8 == 0):
        tT //= 2

    h = hidden_states.reshape(num_experts, T, F)
    grid = (num_experts, T // tT, F // tFi)

    h_spec = pl.BlockSpec((pl.Squeezed(), tT, F), lambda e, t, fi: (e, t, 0))
    down_spec = pl.BlockSpec((pl.Squeezed(), tFi, F), lambda e, t, fi: (e, fi, 0))
    out_spec = pl.BlockSpec((pl.Squeezed(), tT, F), lambda e, t, fi: (e, t, 0))

    if F % 128 == 0 and tFi % 128 == 0:
        # Production path: read both halves of the fused (E, F, 2F) weight directly
        # via two BlockSpecs on the 2F axis (no wrapper-side slice, no HBM copy).
        n_fi = F // tFi
        gate_spec = pl.BlockSpec((pl.Squeezed(), F, tFi), lambda e, t, fi: (e, 0, fi))
        up_spec = pl.BlockSpec((pl.Squeezed(), F, tFi),
                               lambda e, t, fi: (e, 0, fi + n_fi))
        w_gate_in = gate_up_proj
        w_up_in = gate_up_proj
    else:
        # Small / lane-unaligned F: tiny wrapper-side split (copies negligible).
        gate_spec = pl.BlockSpec((pl.Squeezed(), F, tFi), lambda e, t, fi: (e, 0, fi))
        up_spec = pl.BlockSpec((pl.Squeezed(), F, tFi), lambda e, t, fi: (e, 0, fi))
        w_gate_in = gate_up_proj[:, :, :F]
        w_up_in = gate_up_proj[:, :, F:]

    # Device-aware scoped VMEM limit: footprint (already double-buffered) + headroom,
    # clamped below physical capacity (critical on v7x's 64 MiB).
    footprint = _vmem_footprint(tT, tFi, F, itemsize)
    vmem_limit = int(min(0.87 * vmem_capacity, footprint + 8 * 1024 * 1024))
    vmem_limit = max(vmem_limit, 16 * 1024 * 1024)

    grid_spec = pltpu.PrefetchScalarGridSpec(
        num_scalar_prefetch=0,
        grid=grid,
        in_specs=[h_spec, gate_spec, up_spec, down_spec],
        out_specs=out_spec,
        scratch_shapes=[pltpu.VMEM((tT, F), jnp.float32)],
    )

    out = pl.pallas_call(
        _bmm_moe_kernel,
        out_shape=jax.ShapeDtypeStruct((num_experts, T, F), out_dtype),
        grid_spec=grid_spec,
        compiler_params=pltpu.CompilerParams(
            dimension_semantics=("parallel", "parallel", "arbitrary"),
            vmem_limit_bytes=vmem_limit),
    )(h, w_gate_in, w_up_in, down_proj)

    return out.reshape(total_tokens, F)


def _reference(h, gu, dn, compute_dtype=None):
    """Pure-JAX mirror of the PyTorch forward (and of the kernel's bf16 casting)."""
    E, F, _ = gu.shape
    if compute_dtype is not None:
        h = h.astype(compute_dtype)
        gu = gu.astype(compute_dtype)
        dn = dn.astype(compute_dtype)
    h3 = h.reshape(E, -1, F).astype(jnp.float32)
    z = jnp.einsum("etf,efg->etg", h3, gu.astype(jnp.float32))
    gate, up = z[..., :F], z[..., F:]
    inter = up * jnp.maximum(gate, 0.0)
    if compute_dtype is not None:
        inter = inter.astype(compute_dtype).astype(jnp.float32)
    out = jnp.einsum("etf,efg->etg", inter, dn.astype(jnp.float32))
    return out.reshape(-1, F)


if __name__ == "__main__":
    key = jax.random.PRNGKey(0)

    # --- Test 1: toy shapes consistent with the module unit test (f32, strict). ---
    E, F, T = 2, 32, 8
    k1, k2, k3, key = jax.random.split(key, 4)
    h = jax.random.normal(k1, (E * T, F), dtype=jnp.float32)
    gu = jax.random.normal(k2, (E, F, 2 * F), dtype=jnp.float32)
    dn = jax.random.normal(k3, (E, F, F), dtype=jnp.float32)
    out = jax.block_until_ready(bmm_forward(h, gu, dn))
    ref = _reference(h, gu, dn)
    assert out.shape == (E * T, F)
    assert jnp.allclose(out, ref, rtol=1e-4, atol=1e-4), "toy f32 mismatch"

    # --- Test 2: lane-aligned F exercises the fused dual-BlockSpec path (f32). ---
    E, F, T = 2, 256, 128
    k1, k2, k3, key = jax.random.split(key, 4)
    h = jax.random.normal(k1, (E * T, F), dtype=jnp.float32)
    gu = jax.random.normal(k2, (E, F, 2 * F), dtype=jnp.float32)
    dn = jax.random.normal(k3, (E, F, F), dtype=jnp.float32)
    out = jax.block_until_ready(bmm_forward(h, gu, dn))
    ref = _reference(h, gu, dn)
    rel_err = jnp.max(jnp.abs(out - ref)) / (jnp.max(jnp.abs(ref)) + 1e-6)
    assert rel_err < 2e-2, f"fused-path f32 mismatch: rel err {rel_err}"

    # --- Test 3: bf16 operand path (preferred production configuration). ---
    out_bf = jax.block_until_ready(
        bmm_forward(h, gu, dn, compute_dtype=jnp.bfloat16))
    ref_bf = _reference(h, gu, dn, compute_dtype=jnp.bfloat16)
    rel_err = jnp.max(jnp.abs(out_bf - ref_bf)) / (jnp.max(jnp.abs(ref_bf)) + 1e-6)
    assert rel_err < 2e-2, f"bf16 path mismatch: rel err {rel_err}"

    print("KERNEL_OK")
</pallas_src>

<mosaic_0001>
module attributes {stable_mosaic.version = 11 : i64} {
  func.func @_bmm_moe_kernel(%arg0: i32, %arg1: i32, %arg2: i32, %arg3: memref<1x8x32xf32, #tpu.memory_space<vmem>>, %arg4: memref<1x32x32xf32, #tpu.memory_space<vmem>>, %arg5: memref<1x32x32xf32, #tpu.memory_space<vmem>>, %arg6: memref<1x32x32xf32, #tpu.memory_space<vmem>>, %arg7: memref<1x8x32xf32, #tpu.memory_space<vmem>>, %arg8: memref<8x32xf32, #tpu.memory_space<vmem>>) attributes {dimension_semantics = [#tpu.dimension_semantics<parallel>, #tpu.dimension_semantics<parallel>, #tpu.dimension_semantics<arbitrary>], iteration_bounds = array<i64: 2, 1, 1>, scalar_prefetch = 0 : i64, scratch_operands = 1 : i64, tpu.core_type = #tpu.core_type<tc>, window_params = [{transform_indices = @transform_0, window_bounds = array<i64: 1, 8, 32>}, {transform_indices = @transform_1, window_bounds = array<i64: 1, 32, 32>}, {transform_indices = @transform_2, window_bounds = array<i64: 1, 32, 32>}, {transform_indices = @transform_3, window_bounds = array<i64: 1, 32, 32>}, {transform_indices = @transform_4, window_bounds = array<i64: 1, 8, 32>}]} {
    %c0_i32 = arith.constant 0 : i32
    %0 = arith.cmpi eq, %arg2, %c0_i32 : i32
    %1 = arith.extui %0 : i1 to i32
    %c0_i32_0 = arith.constant 0 : i32
    %2 = arith.cmpi ne, %1, %c0_i32_0 : i32
    scf.if %2 {
      %cst_21 = arith.constant 0.000000e+00 : f32
      %23 = vector.broadcast %cst_21 : f32 to vector<8x32xf32>
      %c0_22 = arith.constant 0 : index
      %c0_23 = arith.constant 0 : index
      %24 = vector.load %arg8[%c0_22, %c0_23] : memref<8x32xf32, #tpu.memory_space<vmem>>, vector<8x32xf32>
      tpu.vector_store %arg8[%c0_22, %c0_23], %23 {strides = array<i32>} : memref<8x32xf32, #tpu.memory_space<vmem>>, vector<8x32xf32>,
    } else {
    }
    %c0 = arith.constant 0 : index
    %c0_1 = arith.constant 0 : index
    %c0_2 = arith.constant 0 : index
    %3 = vector.load %arg3[%c0, %c0_1, %c0_2] : memref<1x8x32xf32, #tpu.memory_space<vmem>>, vector<1x8x32xf32>
    %4 = vector.shape_cast %3 : vector<1x8x32xf32> to vector<8x32xf32>
    %c0_3 = arith.constant 0 : index
    %c0_4 = arith.constant 0 : index
    %c0_5 = arith.constant 0 : index
    %5 = vector.load %arg4[%c0_3, %c0_4, %c0_5] : memref<1x32x32xf32, #tpu.memory_space<vmem>>, vector<1x32x32xf32>
    %6 = vector.shape_cast %5 : vector<1x32x32xf32> to vector<32x32xf32>
    %cst = arith.constant dense<0.000000e+00> : vector<8x32xf32>
    %7 = tpu.matmul %4, %6, %cst {dimension_numbers = #tpu.dot_dimension_numbers<[1], [0], [0], [1], [0, 0, 1, 1], [], []>} : vector<8x32xf32>, vector<32x32xf32>, vector<8x32xf32> -> vector<8x32xf32>
    %c0_6 = arith.constant 0 : index
    %c0_7 = arith.constant 0 : index
    %c0_8 = arith.constant 0 : index
    %8 = vector.load %arg5[%c0_6, %c0_7, %c0_8] : memref<1x32x32xf32, #tpu.memory_space<vmem>>, vector<1x32x32xf32>
    %9 = vector.shape_cast %8 : vector<1x32x32xf32> to vector<32x32xf32>
    %cst_9 = arith.constant dense<0.000000e+00> : vector<8x32xf32>
    %10 = tpu.matmul %4, %9, %cst_9 {dimension_numbers = #tpu.dot_dimension_numbers<[1], [0], [0], [1], [0, 0, 1, 1], [], []>} : vector<8x32xf32>, vector<32x32xf32>, vector<8x32xf32> -> vector<8x32xf32>
    %cst_10 = arith.constant 0.000000e+00 : f32
    %11 = vector.broadcast %cst_10 : f32 to vector<8x32xf32>
    %12 = arith.maximumf %7, %11 : vector<8x32xf32>
    %13 = arith.mulf %10, %12 : vector<8x32xf32>
    %c0_11 = arith.constant 0 : index
    %c0_12 = arith.constant 0 : index
    %14 = vector.load %arg8[%c0_11, %c0_12] : memref<8x32xf32, #tpu.memory_space<vmem>>, vector<8x32xf32>
    %c0_13 = arith.constant 0 : index
    %c0_14 = arith.constant 0 : index
    %c0_15 = arith.constant 0 : index
    %15 = vector.load %arg6[%c0_13, %c0_14, %c0_15] : memref<1x32x32xf32, #tpu.memory_space<vmem>>, vector<1x32x32xf32>
    %16 = vector.shape_cast %15 : vector<1x32x32xf32> to vector<32x32xf32>
    %cst_16 = arith.constant dense<0.000000e+00> : vector<8x32xf32>
    %17 = tpu.matmul %13, %16, %cst_16 {dimension_numbers = #tpu.dot_dimension_numbers<[1], [0], [0], [1], [0, 0, 1, 1], [], []>} : vector<8x32xf32>, vector<32x32xf32>, vector<8x32xf32> -> vector<8x32xf32>
    %18 = arith.addf %14, %17 : vector<8x32xf32>
    %c0_17 = arith.constant 0 : index
    %c0_18 = arith.constant 0 : index
    %19 = vector.load %arg8[%c0_17, %c0_18] : memref<8x32xf32, #tpu.memory_space<vmem>>, vector<8x32xf32>
    tpu.vector_store %arg8[%c0_17, %c0_18], %18 {strides = array<i32>} : memref<8x32xf32, #tpu.memory_space<vmem>>, vector<8x32xf32>,
    %c0_i32_19 = arith.constant 0 : i32
    %20 = arith.cmpi eq, %arg2, %c0_i32_19 : i32
    %21 = arith.extui %20 : i1 to i32
    %c0_i32_20 = arith.constant 0 : i32
    %22 = arith.cmpi ne, %21, %c0_i32_20 : i32
    scf.if %22 {
      %c0_21 = arith.constant 0 : index
      %c0_22 = arith.constant 0 : index
      %23 = vector.load %arg8[%c0_21, %c0_22] : memref<8x32xf32, #tpu.memory_space<vmem>>, vector<8x32xf32>
      %c0_23 = arith.constant 0 : index
      %c0_24 = arith.constant 0 : index
      %c0_25 = arith.constant 0 : index
      %24 = vector.load %arg7[%c0_23, %c0_24, %c0_25] : memref<1x8x32xf32, #tpu.memory_space<vmem>>, vector<1x8x32xf32>
      %25 = vector.shape_cast %24 : vector<1x8x32xf32> to vector<8x32xf32>
      %26 = vector.shape_cast %23 : vector<8x32xf32> to vector<1x8x32xf32>
      tpu.vector_store %arg7[%c0_23, %c0_24, %c0_25], %26 {strides = array<i32>} : memref<1x8x32xf32, #tpu.memory_space<vmem>>, vector<1x8x32xf32>,
    } else {
    }
    return
  }
  func.func @transform_0(%arg0: i32, %arg1: i32, %arg2: i32) -> (i32, i32, i32) {
    %c0_i32 = arith.constant 0 : i32
    %c0_i32_0 = arith.constant 0 : i32
    return %arg0, %arg1, %c0_i32 : i32, i32, i32
  }
  func.func @transform_1(%arg0: i32, %arg1: i32, %arg2: i32) -> (i32, i32, i32) {
    %c0_i32 = arith.constant 0 : i32
    %c0_i32_0 = arith.constant 0 : i32
    return %arg0, %c0_i32, %arg2 : i32, i32, i32
  }
  func.func @transform_2(%arg0: i32, %arg1: i32, %arg2: i32) -> (i32, i32, i32) {
    %c0_i32 = arith.constant 0 : i32
    %c0_i32_0 = arith.constant 0 : i32
    return %arg0, %c0_i32, %arg2 : i32, i32, i32
  }
  func.func @transform_3(%arg0: i32, %arg1: i32, %arg2: i32) -> (i32, i32, i32) {
    %c0_i32 = arith.constant 0 : i32
    %c0_i32_0 = arith.constant 0 : i32
    return %arg0, %arg2, %c0_i32 : i32, i32, i32
  }
  func.func @transform_4(%arg0: i32, %arg1: i32, %arg2: i32) -> (i32, i32, i32) {
    %c0_i32 = arith.constant 0 : i32
    %c0_i32_0 = arith.constant 0 : i32
    return %arg0, %arg1, %c0_i32 : i32, i32, i32
  }
}

</mosaic_0001>

<llo_original>
// kernel: tpu_custom_call.1
$region0: #{tpu_custom_call.1}
  #allocation0 [shape = 'u32[]', space=smem, size = 0x4, offset = 0x4, fixed_abs, tag = 'smem constant byte address 0x4 - core index']
  #allocation1 [shape = 'u32[144,128]{1,0:T(1,128)}', space=vmem, size = 0x12000, scoped, tag = 'internal scratch']
  #allocation2 [shape = 'f32[8,32]{1,0:T(8,128)}', space=vmem, size = 0x1000, scoped, tag = 'scratch operand']
  %s0 = inlined_call_operand.hbm [shape: f32[2,8,32], index: 0, kind: input, shape index: {}]
  %s1 = inlined_call_operand.hbm [shape: f32[2,32,32], index: 1, kind: input, shape index: {}]
  %s2 = inlined_call_operand.hbm [shape: f32[2,32,32], index: 2, kind: input, shape index: {}]
  %s3 = inlined_call_operand.hbm [shape: f32[2,32,32], index: 3, kind: input, shape index: {}]
  %s4 = inlined_call_operand.hbm [shape: f32[2,8,32], index: 4, kind: output, shape index: {}]
  %s5 = sld [smem:[#allocation0]]
  $region73: #{tpu_custom_call.1} parent=0
    _
  %s7 = ssub.s32 1, %s5
  %s8 = scalar_select 0, %s7, %s5
  $region1: #{tpu_custom_call.1} parent=0
    #allocation3 [shape = 'u8[8192]{0}', space=vmem, size = 0x2000, scoped, tag = 'input window, operand 0']
    #allocation4 [shape = 's32[2]{0}', space=sflag, size = 0x8, scoped, tag = 'scoped memory for tpu_custom_call.1']
    #allocation5 [shape = 's32[2]{0}', space=sflag, size = 0x8, scoped, tag = 'scoped memory for tpu_custom_call.1']
    #allocation6 [shape = 'u8[32768]{0}', space=vmem, size = 0x8000, scoped, tag = 'input window, operand 1']
    #allocation7 [shape = 's32[2]{0}', space=sflag, size = 0x8, scoped, tag = 'scoped memory for tpu_custom_call.1']
    #allocation8 [shape = 'u8[32768]{0}', space=vmem, size = 0x8000, scoped, tag = 'input window, operand 2']
    #allocation9 [shape = 'u8[32768]{0}', space=vmem, size = 0x8000, scoped, tag = 'input window, operand 3']
    #allocation10 [shape = 's32[2]{0}', space=sflag, size = 0x8, scoped, tag = 'scoped memory for tpu_custom_call.1']
    #allocation11 [shape = 'u8[8192]{0}', space=vmem, size = 0x2000, scoped, tag = 'output window, operand 0']
    %9 = vsyncpa [#allocation4], 0
    %s10 = scalar_lea.sflag [#allocation4], 1
    %11 = vsyncpa %s10, 0
    %12 = vsyncpa [#allocation7], 0
    %s13 = scalar_lea.sflag [#allocation7], 1
    %14 = vsyncpa %s13, 0
    %15 = vsyncpa [#allocation10], 0
    %s16 = scalar_lea.sflag [#allocation10], 1
    %17 = vsyncpa %s16, 0
    %18 = vsyncpa [#allocation5], 0
    %s19 = scalar_lea.sflag [#allocation5], 1
    %20 = vsyncpa %s19, 0
    loop: start=0, step=1, limit=4
    $region2: #{tpu_custom_call.1} parent=1 // loop_pre_header
      _
    $region3: #{tpu_custom_call.1} parent=1 // loop_header
      %s22 = sphi 0, %s26
      %p23 = scmp.ge.s32.totalorder %s22, 4
      %s29 = sphi 0, %s48
      %s30 = sphi 0, %s44
      %s31 = sphi 0, %s40
      %s32 = sphi 0, %s29
      %s33 = sphi 0, %s30
      %s34 = sphi 0, %s31
      %s35 = sphi 0, %s32
      %s36 = sphi 0, %s33
      %s37 = sphi 0, %s34
      %s53 = sphi 0, %s55
      %s56 = sphi 0, %s53
      %s57 = sphi 0, %s56
      %s73 = sphi 0, %s57
      %s81 = sphi 0, %s83
      %s84 = sphi 0, %s81
      %s85 = sphi 0, %s84
      %s101 = sphi 0, %s85
      %s109 = sphi 0, %s111
      %s112 = sphi 0, %s109
      %s113 = sphi 0, %s112
      %s129 = sphi 0, %s113
      %s137 = sphi 0, %s139
      %s140 = sphi 0, %s137
      %s141 = sphi 0, %s140
      %s157 = sphi 0, %s141
      %s165 = sphi 0, %s167
      %s168 = sphi 0, %s165
      %s169 = sphi 0, %s168
      %s185 = sphi 0, %s169
    $region4: #{tpu_custom_call.1} parent=1 // loop_header_branch
      %25 = sbr.rel (%p23) target = $region8
    $region5: #{tpu_custom_call.1} parent=1 // loop_body
      %s27 = ssub.s32 %s22, 1
      %s28 = ssub.s32 %s22, 2
      %s38 = sadd.s32 1, %s31
      %p39 = scmp.ge.s32.totalorder %s38, 1
      %s40 = scalar_select %p39, 0, %s38
      %s41 = sadd.s32 1, %s30
      %s42 = scalar_select %p39, %s41, %s30
      %p43 = scmp.ge.s32.totalorder %s42, 1
      %s44 = scalar_select %p43, 0, %s42
      %s45 = sadd.s32 1, %s29
      %s46 = scalar_select %p43, %s45, %s29
      %p47 = scmp.ge.s32.totalorder %s46, 2
      %s48 = scalar_select %p47, 0, %s46
      %s49 = ssub.s32 %s29, %s48
      %s50 = ssub.s32 %s30, %s44
      %s51 = sor.u32 %s49, %s50
      %p52 = scmp.eq.s32.totalorder %s51, 0
      %s54 = sadd.s32 %s53, 1
      %s55 = scalar_select %p52, %s53, %s54
      %p58 = pneg %p52
      %p59 = scmp.eq.s32.totalorder %s22, 1
      %p60 = por %p58, %p59
      %p61 = scmp.ne.s32.totalorder %s53, %s56
      %p62 = scmp.eq.s32.totalorder %s22, 0
      %p63 = por %p61, %p62
      %p64 = scmp.ne.s32.totalorder %s53, %s56
      %p65 = scmp.eq.s32.totalorder %s27, 1
      %p66 = por %p64, %p65
      %p67 = scmp.ne.s32.totalorder %s56, %s57
      %p68 = scmp.eq.s32.totalorder %s27, 0
      %p69 = por %p67, %p68
      %p70 = scmp.ne.s32.totalorder %s56, %s57
      %p71 = scmp.eq.s32.totalorder %s28, 1
      %p72 = por %p70, %p71
      %p74 = scmp.ne.s32.totalorder %s57, %s73
      %p75 = scmp.eq.s32.totalorder %s28, 0
      %p76 = por %p74, %p75
      %s77 = ssub.s32 %s29, %s48
      %s78 = ssub.s32 %s31, %s40
      %s79 = sor.u32 %s77, %s78
      %p80 = scmp.eq.s32.totalorder %s79, 0
      %s82 = sadd.s32 %s81, 1
      %s83 = scalar_select %p80, %s81, %s82
      %p86 = pneg %p80
      %p87 = scmp.eq.s32.totalorder %s22, 1
      %p88 = por %p86, %p87
      %p89 = scmp.ne.s32.totalorder %s81, %s84
      %p90 = scmp.eq.s32.totalorder %s22, 0
      %p91 = por %p89, %p90
      %p92 = scmp.ne.s32.totalorder %s81, %s84
      %p93 = scmp.eq.s32.totalorder %s27, 1
      %p94 = por %p92, %p93
      %p95 = scmp.ne.s32.totalorder %s84, %s85
      %p96 = scmp.eq.s32.totalorder %s27, 0
      %p97 = por %p95, %p96
      %p98 = scmp.ne.s32.totalorder %s84, %s85
      %p99 = scmp.eq.s32.totalorder %s28, 1
      %p100 = por %p98, %p99
      %p102 = scmp.ne.s32.totalorder %s85, %s101
      %p103 = scmp.eq.s32.totalorder %s28, 0
      %p104 = por %p102, %p103
      %s105 = ssub.s32 %s29, %s48
      %s106 = ssub.s32 %s31, %s40
      %s107 = sor.u32 %s105, %s106
      %p108 = scmp.eq.s32.totalorder %s107, 0
      %s110 = sadd.s32 %s109, 1
      %s111 = scalar_select %p108, %s109, %s110
      %p114 = pneg %p108
      %p115 = scmp.eq.s32.totalorder %s22, 1
      %p116 = por %p114, %p115
      %p117 = scmp.ne.s32.totalorder %s109, %s112
      %p118 = scmp.eq.s32.totalorder %s22, 0
      %p119 = por %p117, %p118
      %p120 = scmp.ne.s32.totalorder %s109, %s112
      %p121 = scmp.eq.s32.totalorder %s27, 1
      %p122 = por %p120, %p121
      %p123 = scmp.ne.s32.totalorder %s112, %s113
      %p124 = scmp.eq.s32.totalorder %s27, 0
      %p125 = por %p123, %p124
      %p126 = scmp.ne.s32.totalorder %s112, %s113
      %p127 = scmp.eq.s32.totalorder %s28, 1
      %p128 = por %p126, %p127
      %p130 = scmp.ne.s32.totalorder %s113, %s129
      %p131 = scmp.eq.s32.totalorder %s28, 0
      %p132 = por %p130, %p131
      %s133 = ssub.s32 %s29, %s48
      %s134 = ssub.s32 %s31, %s40
      %s135 = sor.u32 %s133, %s134
      %p136 = scmp.eq.s32.totalorder %s135, 0
      %s138 = sadd.s32 %s137, 1
      %s139 = scalar_select %p136, %s137, %s138
      %p142 = pneg %p136
      %p143 = scmp.eq.s32.totalorder %s22, 1
      %p144 = por %p142, %p143
      %p145 = scmp.ne.s32.totalorder %s137, %s140
      %p146 = scmp.eq.s32.totalorder %s22, 0
      %p147 = por %p145, %p146
      %p148 = scmp.ne.s32.totalorder %s137, %s140
      %p149 = scmp.eq.s32.totalorder %s27, 1
      %p150 = por %p148, %p149
      %p151 = scmp.ne.s32.totalorder %s140, %s141
      %p152 = scmp.eq.s32.totalorder %s27, 0
      %p153 = por %p151, %p152
      %p154 = scmp.ne.s32.totalorder %s140, %s141
      %p155 = scmp.eq.s32.totalorder %s28, 1
      %p156 = por %p154, %p155
      %p158 = scmp.ne.s32.totalorder %s141, %s157
      %p159 = scmp.eq.s32.totalorder %s28, 0
      %p160 = por %p158, %p159
      %s161 = ssub.s32 %s29, %s48
      %s162 = ssub.s32 %s30, %s44
      %s163 = sor.u32 %s161, %s162
      %p164 = scmp.eq.s32.totalorder %s163, 0
      %s166 = sadd.s32 %s165, 1
      %s167 = scalar_select %p164, %s165, %s166
      %p170 = pneg %p164
      %p171 = scmp.eq.s32.totalorder %s22, 1
      %p172 = por %p170, %p171
      %p173 = scmp.ne.s32.totalorder %s165, %s168
      %p174 = scmp.eq.s32.totalorder %s22, 0
      %p175 = por %p173, %p174
      %p176 = scmp.ne.s32.totalorder %s165, %s168
      %p177 = scmp.eq.s32.totalorder %s27, 1
      %p178 = por %p176, %p177
      %p179 = scmp.ne.s32.totalorder %s168, %s169
      %p180 = scmp.eq.s32.totalorder %s27, 0
      %p181 = por %p179, %p180
      %p182 = scmp.ne.s32.totalorder %s168, %s169
      %p183 = scmp.eq.s32.totalorder %s28, 1
      %p184 = por %p182, %p183
      %p186 = scmp.ne.s32.totalorder %s169, %s185
      %p187 = scmp.eq.s32.totalorder %s28, 0
      %p188 = por %p186, %p187
      %p189 = scmp.le.s32.totalorder 1, %s22
      %p190 = scmp.lt.s32.totalorder %s22, 3
      %p191 = pnand %p189, %p190
      %p192 = pneg %p191
      // Predicated region
      $region9: #{tpu_custom_call.1} parent=5 // pred_check
        _
      $region10: #{tpu_custom_call.1} parent=5 // pred_check_branch
        %194 = sbr.rel (%p191) target = $region12
      $region11: #{tpu_custom_call.1} parent=5 // pred_region
        %s195 = ssub.s32 %s22, 1
      $region12: #{tpu_custom_call.1} parent=5 // pred_fallthru
        _
      %p196 = scmp.lt.s32.totalorder %s22, 2
      // Predicated region
      $region13: #{tpu_custom_call.1} parent=5 // pred_check
        %p197 = pneg %p196
      $region14: #{tpu_custom_call.1} parent=5 // pred_check_branch
        %199 = sbr.rel (%p197) target = $region16
      $region15: #{tpu_custom_call.1} parent=5 // pred_region
        // Predicated region
        $region17: #{tpu_custom_call.1} parent=15 // pred_check
          %p200 = pneg %p63
        $region18: #{tpu_custom_call.1} parent=15 // pred_check_branch
          %202 = sbr.rel (%p200) target = $region20
        $region19: #{tpu_custom_call.1} parent=15 // pred_region
          %s203 = sand.u32 %s53, 1
          %s204 = scalar_lea.sflag [#allocation4], %s203
          %s205 = sand.u32 %s53, 1
          %s206 = smul.addr %s205, 8
          %s207 = scalar_lea.vmem [#allocation3], %s206
          %s209 = ssub.s32 128, 128
          %210 = vsyncadd %s204, %s209
          %s211 = sadd.s32 %s30, %s29
          %s212 = smul.addr %s211, 128
          %s213 = scalar_lea.hbm %s0, %s212
          %s215 = sshll.u32 %s207, 4
          %s216 = int_to_ptr.vmem [resolvable:$true] %s215
          %218 = dma.hbm_to_vmem [thread:$0]  %s213, 128, %s216, %s204
        $region20: #{tpu_custom_call.1} parent=15 // pred_fallthru
          _
        // Predicated region
        $region21: #{tpu_custom_call.1} parent=15 // pred_check
          %p219 = pneg %p91
        $region22: #{tpu_custom_call.1} parent=15 // pred_check_branch
          %221 = sbr.rel (%p219) target = $region24
        $region23: #{tpu_custom_call.1} parent=15 // pred_region
          %s222 = sand.u32 %s22, 1
          %s223 = scalar_lea.sflag [#allocation7], %s222
          %s224 = sand.u32 %s81, 1
          %s225 = smul.addr %s224, 32
          %s226 = scalar_lea.vmem [#allocation6], %s225
          %s228 = ssub.s32 512, 512
          %229 = vsyncadd %s223, %s228
          %s230 = smul.addr %s29, 4
          %s231 = sadd.s32 %s31, %s230
          %s232 = smul.addr %s231, 128
          %s233 = scalar_lea.hbm %s1, %s232
          %s234 = sshll.u32 %s226, 4
          %s235 = int_to_ptr.vmem [resolvable:$true] %s234
          %240 = dma.hbm_to_vmem [thread:$0]  %s233, 512, %s235, %s223, 128, 128, 8
        $region24: #{tpu_custom_call.1} parent=15 // pred_fallthru
          _
        // Predicated region
        $region25: #{tpu_custom_call.1} parent=15 // pred_check
          %p241 = pneg %p119
        $region26: #{tpu_custom_call.1} parent=15 // pred_check_branch
          %243 = sbr.rel (%p241) target = $region28
        $region27: #{tpu_custom_call.1} parent=15 // pred_region
          %s244 = sand.u32 %s22, 1
          %s245 = scalar_lea.sflag [#allocation7], %s244
          %s246 = sand.u32 %s109, 1
          %s247 = smul.addr %s246, 32
          %s248 = scalar_lea.vmem [#allocation8], %s247
          %s250 = ssub.s32 512, 512
          %251 = vsyncadd %s245, %s250
          %s252 = smul.addr %s29, 4
          %s253 = sadd.s32 %s31, %s252
          %s254 = smul.addr %s253, 128
          %s255 = scalar_lea.hbm %s2, %s254
          %s256 = sshll.u32 %s248, 4
          %s257 = int_to_ptr.vmem [resolvable:$true] %s256
          %262 = dma.hbm_to_vmem [thread:$0]  %s255, 512, %s257, %s245, 128, 128, 8
        $region28: #{tpu_custom_call.1} parent=15 // pred_fallthru
          _
        // Predicated region
        $region29: #{tpu_custom_call.1} parent=15 // pred_check
          %p263 = pneg %p147
        $region30: #{tpu_custom_call.1} parent=15 // pred_check_branch
          %265 = sbr.rel (%p263) target = $region32
        $region31: #{tpu_custom_call.1} parent=15 // pred_region
          %s266 = sand.u32 %s137, 1
          %s267 = scalar_lea.sflag [#allocation10], %s266
          %s268 = sand.u32 %s137, 1
          %s269 = smul.addr %s268, 32
          %s270 = scalar_lea.vmem [#allocation9], %s269
          %s271 = smul.u32 4, %s31
          %s273 = ssub.s32 512, 512
          %274 = vsyncadd %s267, %s273
          %s275 = smul.addr %s29, 4
          %s276 = sadd.s32 %s271, %s275
          %s277 = smul.addr %s276, 128
          %s278 = scalar_lea.hbm %s3, %s277
          %s279 = sshll.u32 %s270, 4
          %s280 = int_to_ptr.vmem [resolvable:$true] %s279
          %285 = dma.hbm_to_vmem [thread:$0]  %s278, 512, %s280, %s267, 128, 128, 8
        $region32: #{tpu_custom_call.1} parent=15 // pred_fallthru
          _
      $region16: #{tpu_custom_call.1} parent=5 // pred_fallthru
        _
      %p286 = scmp.le.s32.totalorder 1, %s22
      %p287 = scmp.lt.s32.totalorder %s22, 3
      %p288 = pnand %p286, %p287
      %p289 = pneg %p288
      // Predicated region
      $region33: #{tpu_custom_call.1} parent=5 // pred_check
        _
      $region34: #{tpu_custom_call.1} parent=5 // pred_check_branch
        %291 = sbr.rel (%p288) target = $region36
      $region35: #{tpu_custom_call.1} parent=5 // pred_region
        %s292 = ssub.s32 %s22, 1
        %s293 = sand.u32 %s56, 1
        %s294 = scalar_lea.sflag [#allocation4], %s293
        %s295 = sand.u32 %s56, 1
        %s296 = smul.addr %s295, 8
        %s297 = scalar_lea.vmem [#allocation3], %s296
        // Predicated region
        $region37: #{tpu_custom_call.1} parent=35 // pred_check
          %p298 = pneg %p69
        $region38: #{tpu_custom_call.1} parent=35 // pred_check_branch
          %300 = sbr.rel (%p298) target = $region40
        $region39: #{tpu_custom_call.1} parent=35 // pred_region
          %301 = dma.done %s294, 128
        $region40: #{tpu_custom_call.1} parent=35 // pred_fallthru
          _
        %s302 = sand.u32 %s27, 1
        %s303 = scalar_lea.sflag [#allocation7], %s302
        %s304 = sand.u32 %s84, 1
        %s305 = smul.addr %s304, 32
        %s306 = scalar_lea.vmem [#allocation6], %s305
        // Predicated region
        $region41: #{tpu_custom_call.1} parent=35 // pred_check
          %p307 = pneg %p97
        $region42: #{tpu_custom_call.1} parent=35 // pred_check_branch
          %309 = sbr.rel (%p307) target = $region44
        $region43: #{tpu_custom_call.1} parent=35 // pred_region
          %310 = dma.done %s303, 512
        $region44: #{tpu_custom_call.1} parent=35 // pred_fallthru
          _
        %s311 = sand.u32 %s27, 1
        %s312 = scalar_lea.sflag [#allocation7], %s311
        %s313 = sand.u32 %s112, 1
        %s314 = smul.addr %s313, 32
        %s315 = scalar_lea.vmem [#allocation8], %s314
        // Predicated region
        $region45: #{tpu_custom_call.1} parent=35 // pred_check
          %p316 = pneg %p125
        $region46: #{tpu_custom_call.1} parent=35 // pred_check_branch
          %318 = sbr.rel (%p316) target = $region48
        $region47: #{tpu_custom_call.1} parent=35 // pred_region
          %319 = dma.done %s312, 512
        $region48: #{tpu_custom_call.1} parent=35 // pred_fallthru
          _
        %s320 = sand.u32 %s140, 1
        %s321 = scalar_lea.sflag [#allocation10], %s320
        %s322 = sand.u32 %s140, 1
        %s323 = smul.addr %s322, 32
        %s324 = scalar_lea.vmem [#allocation9], %s323
        // Predicated region
        $region49: #{tpu_custom_call.1} parent=35 // pred_check
          %p325 = pneg %p153
        $region50: #{tpu_custom_call.1} parent=35 // pred_check_branch
          %327 = sbr.rel (%p325) target = $region52
        $region51: #{tpu_custom_call.1} parent=35 // pred_region
          %328 = dma.done %s321, 512
        $region52: #{tpu_custom_call.1} parent=35 // pred_fallthru
          _
        %s329 = sand.u32 %s56, 1
        %s330 = scalar_lea.sflag [#allocation4], %s329
        %s331 = sand.u32 %s56, 1
        %s332 = smul.addr %s331, 8
        %s333 = scalar_lea.vmem [#allocation3], %s332
        %p334 = pneg %p69
        %p335 = pneg %p66
        %s336 = sand.u32 %s27, 1
        %s337 = scalar_lea.sflag [#allocation7], %s336
        %s338 = sand.u32 %s84, 1
        %s339 = smul.addr %s338, 32
        %s340 = scalar_lea.vmem [#allocation6], %s339
        %p341 = pneg %p97
        %p342 = pneg %p94
        %s343 = sand.u32 %s27, 1
        %s344 = scalar_lea.sflag [#allocation7], %s343
        %s345 = sand.u32 %s112, 1
        %s346 = smul.addr %s345, 32
        %s347 = scalar_lea.vmem [#allocation8], %s346
        %p348 = pneg %p125
        %p349 = pneg %p122
        %s350 = sand.u32 %s140, 1
        %s351 = scalar_lea.sflag [#allocation10], %s350
        %s352 = sand.u32 %s140, 1
        %s353 = smul.addr %s352, 32
        %s354 = scalar_lea.vmem [#allocation9], %s353
        %p355 = pneg %p153
        %p356 = pneg %p150
        %p357 = pneg %p181
        %p358 = pneg %p178
        %s359 = sand.u32 %s168, 1
        %s360 = scalar_lea.sflag [#allocation5], %s359
        %s361 = sand.u32 %s168, 1
        %s362 = smul.addr %s361, 8
        %s363 = scalar_lea.vmem [#allocation11], %s362
        %s364 = smul.u32 4, %s34
        %p365 = scmp.eq.s32.totalorder %s34, 0
        // Predicated region
        $region53: #{tpu_custom_call.1} parent=35 // pred_check
          %p366 = pneg %p365
        $region54: #{tpu_custom_call.1} parent=35 // pred_check_branch
          %368 = sbr.rel (%p366) target = $region56
        $region55: #{tpu_custom_call.1} parent=35 // pred_region
          %vm369 = vcmask 261120
          %370 = vst.msk [vmem:[#allocation2] sm:$0xff] %vm369, 0.0
        $region56: #{tpu_custom_call.1} parent=35 // pred_fallthru
          _
        %v371 = vld [vmem:[%s297] sm:$0xff]
        %v372 = vld [vmem:[%s306] sm:$0xff]
        %v373 = vld [vmem:[%s306 + $0x8] sm:$0xff]
        %v374 = vld [vmem:[%s306 + $0x10] sm:$0xff]
        %v375 = vld [vmem:[%s306 + $0x18] sm:$0xff]
        %vm376 = vcmask 261120
        %v378 = vsel %vm376, %v371, 0
        %380 = vmatprep.subr.mxu0 0.0
        %381 = vmatpush1.msra.mxu0 %v372
        %382 = vmatprep.subr.mxu0 0.0
        %383 = vmatpush1.msra.mxu0 %v373
        %384 = vmatprep.subr.mxu0 0.0
        %385 = vmatpush1.msra.mxu0 %v374
        %386 = vmatprep.subr.mxu0 0.0
        %387 = vmatpush1.msra.mxu0 %v375
        %388 = vmatprep.subr.mxu0 0.0
        %389 = vmatpush1.msra.mxu0 0.0
        %390 = vmatprep.subr.mxu0 0.0
        %391 = vmatpush1.msra.mxu0 0.0
        %392 = vmatprep.subr.mxu0 0.0
        %393 = vmatpush1.msra.mxu0 0.0
        %394 = vmatprep.subr.mxu0 0.0
        %395 = vmatpush1.msra.mxu0 0.0
        %396 = vmatprep.subr.mxu0 0.0
        %397 = vmatpush1.msra.mxu0 0.0
        %398 = vmatprep.subr.mxu0 0.0
        %399 = vmatpush1.msra.mxu0 0.0
        %400 = vmatprep.subr.mxu0 0.0
        %401 = vmatpush1.msra.mxu0 0.0
        %402 = vmatprep.subr.mxu0 0.0
        %403 = vmatpush1.msra.mxu0 0.0
        %404 = vmatprep.subr.mxu0 0.0
        %405 = vmatpush1.msra.mxu0 0.0
        %406 = vmatprep.subr.mxu0 0.0
        %407 = vmatpush1.msra.mxu0 0.0
        %408 = vmatprep.subr.mxu0 0.0
        %409 = vmatpush1.msra.mxu0 0.0
        %410 = vmatprep.subr.mxu0 0.0
        %411 = vmatpush1.msra.mxu0 0.0
        %412 = vmatprep.subr.mxu0 0.0
        %413 = vmatpush1.msra.mxu0 0.0
        %414 = vmatprep.subr.mxu0 0.0
        %415 = vmatpush1.msra.mxu0 0.0
        %416 = vmatprep.subr.mxu0 0.0
        %417 = vmatpush1.msra.mxu0 0.0
        %418 = vmatprep.subr.mxu0 0.0
        %419 = vmatpush1.msra.mxu0 0.0
        %420 = vmatprep.subr.mxu0 0.0
        %421 = vmatpush1.msra.mxu0 0.0
        %422 = vmatprep.subr.mxu0 0.0
        %423 = vmatpush1.msra.mxu0 0.0
        %424 = vmatprep.subr.mxu0 0.0
        %425 = vmatpush1.msra.mxu0 0.0
        %426 = vmatprep.subr.mxu0 0.0
        %427 = vmatpush1.msra.mxu0 0.0
        %428 = vmatprep.subr.mxu0 0.0
        %429 = vmatpush1.msra.mxu0 0.0
        %430 = vmatprep.subr.mxu0 0.0
        %431 = vmatpush1.msra.mxu0 0.0
        %432 = vmatprep.subr.mxu0 0.0
        %433 = vmatpush1.msra.mxu0 0.0
        %434 = vmatprep.subr.mxu0 0.0
        %435 = vmatpush1.msra.mxu0 0.0
        %436 = vmatprep.subr.mxu0 0.0
        %437 = vmatpush1.msra.mxu0 0.0
        %438 = vmatprep.subr.mxu0 0.0
        %439 = vmatpush1.msra.mxu0 0.0
        %440 = vmatprep.subr.mxu0 0.0
        %441 = vmatpush1.msra.mxu0 0.0
        %442 = vmatprep.subr.mxu0 0.0
        %443 = vmatpush1.msra.mxu0 0.0
        %444 = vmatprep.mubr.f32.mxu0 0.0
        %445 = vmatmul.mubr.f32.gmra.mrb[0].mxu0 %v378
        %v446 = vpop.f32.mrb[0].mxu0
        %v447 = vadd.f32 0.0, %v446
        %v448 = vpop.f32.mrb[0].mxu0
        %449 = vdwg.mxu0
        %v450 = vld [vmem:[%s315] sm:$0xff]
        %v451 = vld [vmem:[%s315 + $0x8] sm:$0xff]
        %v452 = vld [vmem:[%s315 + $0x10] sm:$0xff]
        %v453 = vld [vmem:[%s315 + $0x18] sm:$0xff]
        %454 = vmatprep.subr.mxu0 0.0
        %455 = vmatpush1.msra.mxu0 %v450
        %456 = vmatprep.subr.mxu0 0.0
        %457 = vmatpush1.msra.mxu0 %v451
        %458 = vmatprep.subr.mxu0 0.0
        %459 = vmatpush1.msra.mxu0 %v452
        %460 = vmatprep.subr.mxu0 0.0
        %461 = vmatpush1.msra.mxu0 %v453
        %462 = vmatprep.subr.mxu0 0.0
        %463 = vmatpush1.msra.mxu0 0.0
        %464 = vmatprep.subr.mxu0 0.0
        %465 = vmatpush1.msra.mxu0 0.0
        %466 = vmatprep.subr.mxu0 0.0
        %467 = vmatpush1.msra.mxu0 0.0
        %468 = vmatprep.subr.mxu0 0.0
        %469 = vmatpush1.msra.mxu0 0.0
        %470 = vmatprep.subr.mxu0 0.0
        %471 = vmatpush1.msra.mxu0 0.0
        %472 = vmatprep.subr.mxu0 0.0
        %473 = vmatpush1.msra.mxu0 0.0
        %474 = vmatprep.subr.mxu0 0.0
        %475 = vmatpush1.msra.mxu0 0.0
        %476 = vmatprep.subr.mxu0 0.0
        %477 = vmatpush1.msra.mxu0 0.0
        %478 = vmatprep.subr.mxu0 0.0
        %479 = vmatpush1.msra.mxu0 0.0
        %480 = vmatprep.subr.mxu0 0.0
        %481 = vmatpush1.msra.mxu0 0.0
        %482 = vmatprep.subr.mxu0 0.0
        %483 = vmatpush1.msra.mxu0 0.0
        %484 = vmatprep.subr.mxu0 0.0
        %485 = vmatpush1.msra.mxu0 0.0
        %486 = vmatprep.subr.mxu0 0.0
        %487 = vmatpush1.msra.mxu0 0.0
        %488 = vmatprep.subr.mxu0 0.0
        %489 = vmatpush1.msra.mxu0 0.0
        %490 = vmatprep.subr.mxu0 0.0
        %491 = vmatpush1.msra.mxu0 0.0
        %492 = vmatprep.subr.mxu0 0.0
        %493 = vmatpush1.msra.mxu0 0.0
        %494 = vmatprep.subr.mxu0 0.0
        %495 = vmatpush1.msra.mxu0 0.0
        %496 = vmatprep.subr.mxu0 0.0
        %497 = vmatpush1.msra.mxu0 0.0
        %498 = vmatprep.subr.mxu0 0.0
        %499 = vmatpush1.msra.mxu0 0.0
        %500 = vmatprep.subr.mxu0 0.0
        %501 = vmatpush1.msra.mxu0 0.0
        %502 = vmatprep.subr.mxu0 0.0
        %503 = vmatpush1.msra.mxu0 0.0
        %504 = vmatprep.subr.mxu0 0.0
        %505 = vmatpush1.msra.mxu0 0.0
        %506 = vmatprep.subr.mxu0 0.0
        %507 = vmatpush1.msra.mxu0 0.0
        %508 = vmatprep.subr.mxu0 0.0
        %509 = vmatpush1.msra.mxu0 0.0
        %510 = vmatprep.subr.mxu0 0.0
        %511 = vmatpush1.msra.mxu0 0.0
        %512 = vmatprep.subr.mxu0 0.0
        %513 = vmatpush1.msra.mxu0 0.0
        %514 = vmatprep.subr.mxu0 0.0
        %515 = vmatpush1.msra.mxu0 0.0
        %516 = vmatprep.subr.mxu0 0.0
        %517 = vmatpush1.msra.mxu0 0.0
        %518 = vmatprep.mubr.f32.mxu0 0.0
        %519 = vmatmul.mubr.f32.gmra.mrb[0].mxu0 %v378
        %v520 = vpop.f32.mrb[0].mxu0
        %v521 = vadd.f32 0.0, %v520
        %v522 = vpop.f32.mrb[0].mxu0
        %523 = vdwg.mxu0
        %v524 = vmax.f32 %v447, 0.0
        %v525 = vmul.f32 %v521, %v524
        %v526 = vld [vmem:[#allocation2] sm:$0xff]
        %v527 = vld [vmem:[%s324] sm:$0xff]
        %v528 = vld [vmem:[%s324 + $0x8] sm:$0xff]
        %v529 = vld [vmem:[%s324 + $0x10] sm:$0xff]
        %v530 = vld [vmem:[%s324 + $0x18] sm:$0xff]
        %v532 = vsel %vm376, %v525, 0
        %534 = vmatprep.subr.mxu0 0.0
        %535 = vmatpush1.msra.mxu0 %v527
        %536 = vmatprep.subr.mxu0 0.0
        %537 = vmatpush1.msra.mxu0 %v528
        %538 = vmatprep.subr.mxu0 0.0
        %539 = vmatpush1.msra.mxu0 %v529
        %540 = vmatprep.subr.mxu0 0.0
        %541 = vmatpush1.msra.mxu0 %v530
        %542 = vmatprep.subr.mxu0 0.0
        %543 = vmatpush1.msra.mxu0 0.0
        %544 = vmatprep.subr.mxu0 0.0
        %545 = vmatpush1.msra.mxu0 0.0
        %546 = vmatprep.subr.mxu0 0.0
        %547 = vmatpush1.msra.mxu0 0.0
        %548 = vmatprep.subr.mxu0 0.0
        %549 = vmatpush1.msra.mxu0 0.0
        %550 = vmatprep.subr.mxu0 0.0
        %551 = vmatpush1.msra.mxu0 0.0
        %552 = vmatprep.subr.mxu0 0.0
        %553 = vmatpush1.msra.mxu0 0.0
        %554 = vmatprep.subr.mxu0 0.0
        %555 = vmatpush1.msra.mxu0 0.0
        %556 = vmatprep.subr.mxu0 0.0
        %557 = vmatpush1.msra.mxu0 0.0
        %558 = vmatprep.subr.mxu0 0.0
        %559 = vmatpush1.msra.mxu0 0.0
        %560 = vmatprep.subr.mxu0 0.0
        %561 = vmatpush1.msra.mxu0 0.0
        %562 = vmatprep.subr.mxu0 0.0
        %563 = vmatpush1.msra.mxu0 0.0
        %564 = vmatprep.subr.mxu0 0.0
        %565 = vmatpush1.msra.mxu0 0.0
        %566 = vmatprep.subr.mxu0 0.0
        %567 = vmatpush1.msra.mxu0 0.0
        %568 = vmatprep.subr.mxu0 0.0
        %569 = vmatpush1.msra.mxu0 0.0
        %570 = vmatprep.subr.mxu0 0.0
        %571 = vmatpush1.msra.mxu0 0.0
        %572 = vmatprep.subr.mxu0 0.0
        %573 = vmatpush1.msra.mxu0 0.0
        %574 = vmatprep.subr.mxu0 0.0
        %575 = vmatpush1.msra.mxu0 0.0
        %576 = vmatprep.subr.mxu0 0.0
        %577 = vmatpush1.msra.mxu0 0.0
        %578 = vmatprep.subr.mxu0 0.0
        %579 = vmatpush1.msra.mxu0 0.0
        %580 = vmatprep.subr.mxu0 0.0
        %581 = vmatpush1.msra.mxu0 0.0
        %582 = vmatprep.subr.mxu0 0.0
        %583 = vmatpush1.msra.mxu0 0.0
        %584 = vmatprep.subr.mxu0 0.0
        %585 = vmatpush1.msra.mxu0 0.0
        %586 = vmatprep.subr.mxu0 0.0
        %587 = vmatpush1.msra.mxu0 0.0
        %588 = vmatprep.subr.mxu0 0.0
        %589 = vmatpush1.msra.mxu0 0.0
        %590 = vmatprep.subr.mxu0 0.0
        %591 = vmatpush1.msra.mxu0 0.0
        %592 = vmatprep.subr.mxu0 0.0
        %593 = vmatpush1.msra.mxu0 0.0
        %594 = vmatprep.subr.mxu0 0.0
        %595 = vmatpush1.msra.mxu0 0.0
        %596 = vmatprep.subr.mxu0 0.0
        %597 = vmatpush1.msra.mxu0 0.0
        %598 = vmatprep.mubr.f32.mxu0 0.0
        %599 = vmatmul.mubr.f32.gmra.mrb[0].mxu0 %v532
        %v600 = vpop.f32.mrb[0].mxu0
        %v601 = vadd.f32 0.0, %v600
        %v602 = vpop.f32.mrb[0].mxu0
        %603 = vdwg.mxu0
        %v604 = vadd.f32 %v526, %v601
        %605 = vst.msk [vmem:[#allocation2] sm:$0xff] %vm376, %v604
        // Predicated region
        $region57: #{tpu_custom_call.1} parent=35 // pred_check
          %p606 = pneg %p365
        $region58: #{tpu_custom_call.1} parent=35 // pred_check_branch
          %608 = sbr.rel (%p606) target = $region60
        $region59: #{tpu_custom_call.1} parent=35 // pred_region
          %v609 = vld [vmem:[#allocation2] sm:$0xff]
          %610 = vst.msk [vmem:[%s363] sm:$0xff] %vm376, %v609
        $region60: #{tpu_custom_call.1} parent=35 // pred_fallthru
          _
        %s611 = sand.u32 %s168, 1
        %s612 = scalar_lea.sflag [#allocation5], %s611
        %s613 = sand.u32 %s168, 1
        %s614 = smul.addr %s613, 8
        %s615 = scalar_lea.vmem [#allocation11], %s614
        // Predicated region
        $region61: #{tpu_custom_call.1} parent=35 // pred_check
          %p616 = pneg %p178
        $region62: #{tpu_custom_call.1} parent=35 // pred_check_branch
          %618 = sbr.rel (%p616) target = $region64
        $region63: #{tpu_custom_call.1} parent=35 // pred_region
          %s620 = ssub.s32 128, 128
          %621 = vsyncadd %s612, %s620
          %s622 = sadd.s32 %s33, %s32
          %s623 = smul.addr %s622, 128
          %s624 = scalar_lea.hbm %s4, %s623
          %s626 = sshll.u32 %s615, 4
          %s627 = int_to_ptr.vmem [resolvable:$true] %s626
          %629 = dma.vmem_to_hbm [thread:$0]  %s627, 128, %s624, %s612
        $region64: #{tpu_custom_call.1} parent=35 // pred_fallthru
          _
      $region36: #{tpu_custom_call.1} parent=5 // pred_fallthru
        _
      %p630 = scmp.le.s32.totalorder 2, %s22
      // Predicated region
      $region65: #{tpu_custom_call.1} parent=5 // pred_check
        %p631 = pneg %p630
      $region66: #{tpu_custom_call.1} parent=5 // pred_check_branch
        %633 = sbr.rel (%p631) target = $region68
      $region67: #{tpu_custom_call.1} parent=5 // pred_region
        %s634 = ssub.s32 %s22, 2
        // Predicated region
        $region69: #{tpu_custom_call.1} parent=67 // pred_check
          %p635 = pneg %p184
        $region70: #{tpu_custom_call.1} parent=67 // pred_check_branch
          %637 = sbr.rel (%p635) target = $region72
        $region71: #{tpu_custom_call.1} parent=67 // pred_region
          %s638 = sand.u32 %s169, 1
          %s639 = scalar_lea.sflag [#allocation5], %s638
          %s640 = sand.u32 %s169, 1
          %s641 = smul.addr %s640, 8
          %s642 = scalar_lea.vmem [#allocation11], %s641
          %643 = dma.done %s639, 128
        $region72: #{tpu_custom_call.1} parent=67 // pred_fallthru
          _
      $region68: #{tpu_custom_call.1} parent=5 // pred_fallthru
        _
    $region6: #{tpu_custom_call.1} parent=1 // loop_footer
      %s26 = sadd.s32 1, %s22
    $region7: #{tpu_custom_call.1} parent=1 // loop_footer_branch
      %21 = sbr.rel target = $region3
    $region8: #{tpu_custom_call.1} parent=1 // loop_exit
      _
    %644 = vsyncpa [#allocation4], 1
    %s645 = scalar_lea.sflag [#allocation4], 1
    %646 = vsyncpa %s645, 1
    %647 = vsyncpa [#allocation7], 1
    %s648 = scalar_lea.sflag [#allocation7], 1
    %649 = vsyncpa %s648, 1
    %650 = vsyncpa [#allocation10], 1
    %s651 = scalar_lea.sflag [#allocation10], 1
    %652 = vsyncpa %s651, 1
    %653 = vsyncpa [#allocation5], 1
    %s654 = scalar_lea.sflag [#allocation5], 1
    %655 = vsyncpa %s654, 1

</llo_original>
